<compile_context>
chip_gen: v5e
topology: v5e:2x2
jax: 0.10.0
libtpu: 0.0.40
codegen_flags: <defaults>
</compile_context>

<pallas_src>
import jax
import jax.numpy as jnp
from jax.experimental import pallas as pl
from jax.experimental.pallas import tpu as pltpu

NUM_CLASSES = 20          # net3 width; net1 (13) / net2 (15) zero-padded to this
HEAD_PAD = 32             # per-head logits padded 20 -> 32 lanes (zero columns)
HIDDEN = 128
IN_FEATS = 28 * 28
N_HEADS = 3
W1_N = N_HEADS * HIDDEN   # 384: fused first-layer output width


def _round_up(n, m):
    return ((n + m - 1) // m) * m


def _choose_tile_b(Bp, requested):
    """Bp is already a multiple of 8."""
    tb = min(requested, Bp)
    # Keep >= 2 grid steps when the batch is large enough so the "parallel"
    # batch axis actually feeds both v7x TensorCores.
    if Bp >= 512:
        tb = min(tb, _round_up(pl.cdiv(Bp, 2), 256))
    # Alignment: multiple of 256 when large (fills MXU M dim), else multiple of 8.
    if tb >= 256:
        tb -= tb % 256
    else:
        tb -= tb % 8
    return max(tb, 8)


def ensemble_kernel(x_ref, w1_ref, b1_ref, w2_ref, b2_ref, out_ref):
    # Fused first layer of all three heads: one [TB,784]x[784,384] bf16 MXU pass.
    x = x_ref[...]                                              # [TB, 784] bf16
    h = jnp.dot(x, w1_ref[...], preferred_element_type=jnp.float32)
    h = jnp.maximum(h + b1_ref[...], 0.0)                       # f32 bias + ReLU
    h = h.astype(jnp.bfloat16)                                  # [TB, 384] bf16

    # Per-head second layers on 128-lane-aligned slices of h (no lane shuffles).
    def head(i):
        hi = h[:, i * HIDDEN:(i + 1) * HIDDEN]                  # lane-aligned slice
        return (jnp.dot(hi, w2_ref[i], preferred_element_type=jnp.float32)
                + b2_ref[i])                                    # [TB, 32] f32

    o1, o2, o3 = head(0), head(1), head(2)                      # cols 20..31 are 0

    def pred_gt_9(o):
        # argmax(o[:, :20]) > 9  <=>  max(o[:, 10:20]) > max(o[:, :10]).
        # Strict '>' preserves torch.max's first-occurrence tie-break; the
        # zero-padded columns 13..19 / 15..19 are included exactly like the
        # original torch.cat(zeros) padding; pad columns 20..31 are excluded.
        lo = jnp.max(o[:, :10], axis=-1, keepdims=True)
        hi = jnp.max(o[:, 10:NUM_CLASSES], axis=-1, keepdims=True)
        return hi > lo

    c1, c2, c3 = pred_gt_9(o1), pred_gt_9(o2), pred_gt_9(o3)

    avg = (o1 + o2 + o3) * (1.0 / 3.0)
    # Per-row branching of trip_3_5_20.forward:
    #   pred3 > 9 -> net3 ; elif pred2 > 9 -> net2 ; elif pred1 > 9 -> net1 ; else avg
    out_ref[...] = jnp.where(c3, o3, jnp.where(c2, o2, jnp.where(c1, o1, avg)))


def trip_3_5_20_forward(x_nchw, params, tile_b=1024):
    """params = (W1 [784,384] bf16, B1 [1,384] f32, W2 [3,128,32] bf16, B2 [3,1,32] f32)."""
    w1, b1, w2, b2 = params
    B = x_nchw.shape[0]

    # Single fused pass over x: flatten (view) + bf16 cast -> this IS the HBM stream.
    x = x_nchw.reshape(B, -1).astype(jnp.bfloat16)              # == x.view(B, -1)

    # Minimal sublane pad only (<= 7 rows); no full-tile padding / copy of x.
    Bp = _round_up(B, 8)
    if Bp != B:
        x = jnp.pad(x, ((0, Bp - B), (0, 0)))

    tb = _choose_tile_b(Bp, tile_b)
    grid = (pl.cdiv(Bp, tb),)    # ragged last block handled by Pallas block padding

    cost = pl.CostEstimate(
        flops=2 * Bp * IN_FEATS * W1_N + 2 * Bp * W1_N * HEAD_PAD,
        transcendentals=0,
        bytes_accessed=(2 * (Bp * IN_FEATS + IN_FEATS * W1_N + W1_N * HEAD_PAD)
                        + 4 * (W1_N + N_HEADS * HEAD_PAD + Bp * HEAD_PAD)),
    )

    out = pl.pallas_call(
        ensemble_kernel,
        out_shape=jax.ShapeDtypeStruct((Bp, HEAD_PAD), jnp.float32),
        grid=grid,
        in_specs=[
            pl.BlockSpec((tb, IN_FEATS), lambda i: (i, 0)),               # x: batch-tiled
            pl.BlockSpec((IN_FEATS, W1_N), lambda i: (0, 0)),             # W1: VMEM-resident
            pl.BlockSpec((1, W1_N), lambda i: (0, 0)),                    # B1
            pl.BlockSpec((N_HEADS, HIDDEN, HEAD_PAD), lambda i: (0, 0, 0)),  # W2 per-head
            pl.BlockSpec((N_HEADS, 1, HEAD_PAD), lambda i: (0, 0, 0)),       # B2 per-head
        ],
        out_specs=pl.BlockSpec((tb, HEAD_PAD), lambda i: (i, 0)),
        compiler_params=pltpu.CompilerParams(
            dimension_semantics=("parallel",)),                           # megacore on v7x
        cost_estimate=cost,
    )(x, w1, b1, w2, b2)

    return out[:B, :NUM_CLASSES]


def init_params(key):
    """Deterministic PyTorch-Linear-style (uniform +-1/sqrt(fan_in)) init, pre-fused
    into the layouts the kernel expects; matmul weights bf16, biases f32."""
    def dense(k, fan_in, fan_out):
        k1, k2 = jax.random.split(k)
        bound = 1.0 / float(fan_in) ** 0.5
        w = jax.random.uniform(k1, (fan_in, fan_out), jnp.float32, -bound, bound)
        b = jax.random.uniform(k2, (1, fan_out), jnp.float32, -bound, bound)
        return w, b

    w1s, b1s, w2s, b2s = [], [], [], []
    for i, ncls in enumerate((13, 15, 20)):            # net1, net2, net3
        k = jax.random.fold_in(key, i)
        k1, k2 = jax.random.split(k)
        w1, b1 = dense(k1, IN_FEATS, HIDDEN)
        w2, b2 = dense(k2, HIDDEN, ncls)
        pad = HEAD_PAD - ncls
        w2 = jnp.pad(w2, ((0, 0), (0, pad)))           # == torch.cat((out, zeros), 1)
        b2 = jnp.pad(b2, ((0, 0), (0, pad)))
        w1s.append(w1); b1s.append(b1); w2s.append(w2); b2s.append(b2)

    w1_all = jnp.concatenate(w1s, axis=1).astype(jnp.bfloat16)   # [784, 384]
    b1_all = jnp.concatenate(b1s, axis=1)                        # [1, 384]  f32
    w2_all = jnp.stack(w2s, axis=0).astype(jnp.bfloat16)         # [3, 128, 32]
    b2_all = jnp.stack(b2s, axis=0)                              # [3, 1, 32] f32
    return (w1_all, b1_all, w2_all, b2_all)


if __name__ == "__main__":
    key = jax.random.PRNGKey(0)
    pkey, xkey = jax.random.split(key)
    params = init_params(pkey)
    x = jax.random.normal(xkey, (2, 1, 28, 28), jnp.float32)   # MNIST-like NCHW, batch=2
    out = trip_3_5_20_forward(x, params)
    jax.block_until_ready(out)
    assert out.shape == (2, NUM_CLASSES) and out.dtype == jnp.float32
    assert bool(jnp.all(jnp.isfinite(out)))
    print("KERNEL_OK")
</pallas_src>

<mosaic_0001>
module attributes {stable_mosaic.version = 11 : i64} {
  func.func @ensemble_kernel(%arg0: i32, %arg1: memref<8x784xbf16, #tpu.memory_space<vmem>>, %arg2: memref<784x384xbf16, #tpu.memory_space<vmem>>, %arg3: memref<1x384xf32, #tpu.memory_space<vmem>>, %arg4: memref<3x128x32xbf16, #tpu.memory_space<vmem>>, %arg5: memref<3x1x32xf32, #tpu.memory_space<vmem>>, %arg6: memref<8x32xf32, #tpu.memory_space<vmem>>) attributes {dimension_semantics = [#tpu.dimension_semantics<parallel>], iteration_bounds = array<i64: 1>, scalar_prefetch = 0 : i64, scratch_operands = 0 : i64, tpu.core_type = #tpu.core_type<tc>, window_params = [{transform_indices = @transform_0, window_bounds = array<i64: 8, 784>}, {pipeline_mode = #tpu.pipeline_mode<synchronous>, transform_indices = @transform_1, window_bounds = array<i64: 784, 384>}, {pipeline_mode = #tpu.pipeline_mode<synchronous>, transform_indices = @transform_2, window_bounds = array<i64: 1, 384>}, {pipeline_mode = #tpu.pipeline_mode<synchronous>, transform_indices = @transform_3, window_bounds = array<i64: 3, 128, 32>}, {pipeline_mode = #tpu.pipeline_mode<synchronous>, transform_indices = @transform_4, window_bounds = array<i64: 3, 1, 32>}, {transform_indices = @transform_5, window_bounds = array<i64: 8, 32>}]} {
    %c0 = arith.constant 0 : index
    %c0_0 = arith.constant 0 : index
    %0 = vector.load %arg1[%c0, %c0_0] : memref<8x784xbf16, #tpu.memory_space<vmem>>, vector<8x784xbf16>
    %c0_1 = arith.constant 0 : index
    %c0_2 = arith.constant 0 : index
    %1 = vector.load %arg2[%c0_1, %c0_2] : memref<784x384xbf16, #tpu.memory_space<vmem>>, vector<784x384xbf16>
    %cst = arith.constant dense<0.000000e+00> : vector<8x384xf32>
    %2 = tpu.matmul %0, %1, %cst {dimension_numbers = #tpu.dot_dimension_numbers<[1], [0], [0], [1], [0, 0, 1, 1], [], []>} : vector<8x784xbf16>, vector<784x384xbf16>, vector<8x384xf32> -> vector<8x384xf32>
    %c0_3 = arith.constant 0 : index
    %c0_4 = arith.constant 0 : index
    %3 = vector.load %arg3[%c0_3, %c0_4] : memref<1x384xf32, #tpu.memory_space<vmem>>, vector<1x384xf32>
    %4 = vector.broadcast %3 : vector<1x384xf32> to vector<8x384xf32>
    %5 = arith.addf %2, %4 : vector<8x384xf32>
    %cst_5 = arith.constant 0.000000e+00 : f32
    %6 = vector.broadcast %cst_5 : f32 to vector<8x384xf32>
    %7 = arith.maximumf %5, %6 : vector<8x384xf32>
    %8 = arith.truncf %7 : vector<8x384xf32> to vector<8x384xbf16>
    %9 = vector.extract_strided_slice %8 {offsets = [0, 0], sizes = [8, 128], strides = [1, 1]} : vector<8x384xbf16> to vector<8x128xbf16>
    %c0_6 = arith.constant 0 : index
    %c0_7 = arith.constant 0 : index
    %c0_8 = arith.constant 0 : index
    %10 = vector.load %arg4[%c0_6, %c0_7, %c0_8] : memref<3x128x32xbf16, #tpu.memory_space<vmem>>, vector<1x128x32xbf16>
    %11 = vector.shape_cast %10 : vector<1x128x32xbf16> to vector<128x32xbf16>
    %cst_9 = arith.constant dense<0.000000e+00> : vector<8x32xf32>
    %12 = tpu.matmul %9, %11, %cst_9 {dimension_numbers = #tpu.dot_dimension_numbers<[1], [0], [0], [1], [0, 0, 1, 1], [], []>} : vector<8x128xbf16>, vector<128x32xbf16>, vector<8x32xf32> -> vector<8x32xf32>
    %c0_10 = arith.constant 0 : index
    %c0_11 = arith.constant 0 : index
    %c0_12 = arith.constant 0 : index
    %13 = vector.load %arg5[%c0_10, %c0_11, %c0_12] : memref<3x1x32xf32, #tpu.memory_space<vmem>>, vector<1x1x32xf32>
    %14 = vector.shape_cast %13 : vector<1x1x32xf32> to vector<1x32xf32>
    %15 = vector.broadcast %14 : vector<1x32xf32> to vector<8x32xf32>
    %16 = arith.addf %12, %15 : vector<8x32xf32>
    %17 = vector.extract_strided_slice %8 {offsets = [0, 128], sizes = [8, 128], strides = [1, 1]} : vector<8x384xbf16> to vector<8x128xbf16>
    %c1 = arith.constant 1 : index
    %c0_13 = arith.constant 0 : index
    %c0_14 = arith.constant 0 : index
    %18 = vector.load %arg4[%c1, %c0_13, %c0_14] : memref<3x128x32xbf16, #tpu.memory_space<vmem>>, vector<1x128x32xbf16>
    %19 = vector.shape_cast %18 : vector<1x128x32xbf16> to vector<128x32xbf16>
    %cst_15 = arith.constant dense<0.000000e+00> : vector<8x32xf32>
    %20 = tpu.matmul %17, %19, %cst_15 {dimension_numbers = #tpu.dot_dimension_numbers<[1], [0], [0], [1], [0, 0, 1, 1], [], []>} : vector<8x128xbf16>, vector<128x32xbf16>, vector<8x32xf32> -> vector<8x32xf32>
    %c1_16 = arith.constant 1 : index
    %c0_17 = arith.constant 0 : index
    %c0_18 = arith.constant 0 : index
    %21 = vector.load %arg5[%c1_16, %c0_17, %c0_18] : memref<3x1x32xf32, #tpu.memory_space<vmem>>, vector<1x1x32xf32>
    %22 = vector.shape_cast %21 : vector<1x1x32xf32> to vector<1x32xf32>
    %23 = vector.broadcast %22 : vector<1x32xf32> to vector<8x32xf32>
    %24 = arith.addf %20, %23 : vector<8x32xf32>
    %25 = vector.extract_strided_slice %8 {offsets = [0, 256], sizes = [8, 128], strides = [1, 1]} : vector<8x384xbf16> to vector<8x128xbf16>
    %c2 = arith.constant 2 : index
    %c0_19 = arith.constant 0 : index
    %c0_20 = arith.constant 0 : index
    %26 = vector.load %arg4[%c2, %c0_19, %c0_20] : memref<3x128x32xbf16, #tpu.memory_space<vmem>>, vector<1x128x32xbf16>
    %27 = vector.shape_cast %26 : vector<1x128x32xbf16> to vector<128x32xbf16>
    %cst_21 = arith.constant dense<0.000000e+00> : vector<8x32xf32>
    %28 = tpu.matmul %25, %27, %cst_21 {dimension_numbers = #tpu.dot_dimension_numbers<[1], [0], [0], [1], [0, 0, 1, 1], [], []>} : vector<8x128xbf16>, vector<128x32xbf16>, vector<8x32xf32> -> vector<8x32xf32>
    %c2_22 = arith.constant 2 : index
    %c0_23 = arith.constant 0 : index
    %c0_24 = arith.constant 0 : index
    %29 = vector.load %arg5[%c2_22, %c0_23, %c0_24] : memref<3x1x32xf32, #tpu.memory_space<vmem>>, vector<1x1x32xf32>
    %30 = vector.shape_cast %29 : vector<1x1x32xf32> to vector<1x32xf32>
    %31 = vector.broadcast %30 : vector<1x32xf32> to vector<8x32xf32>
    %32 = arith.addf %28, %31 : vector<8x32xf32>
    %33 = vector.extract_strided_slice %16 {offsets = [0, 0], sizes = [8, 10], strides = [1, 1]} : vector<8x32xf32> to vector<8x10xf32>
    %cst_25 = arith.constant dense<0xFF800000> : vector<8xf32>
    %34 = vector.multi_reduction <maximumf>, %33, %cst_25 [1] : vector<8x10xf32> to vector<8xf32>
    %35 = vector.shape_cast %34 : vector<8xf32> to vector<8x1xf32>
    %36 = vector.extract_strided_slice %16 {offsets = [0, 10], sizes = [8, 10], strides = [1, 1]} : vector<8x32xf32> to vector<8x10xf32>
    %cst_26 = arith.constant dense<0xFF800000> : vector<8xf32>
    %37 = vector.multi_reduction <maximumf>, %36, %cst_26 [1] : vector<8x10xf32> to vector<8xf32>
    %38 = vector.shape_cast %37 : vector<8xf32> to vector<8x1xf32>
    %39 = arith.cmpf ogt, %38, %35 : vector<8x1xf32>
    %40 = vector.extract_strided_slice %24 {offsets = [0, 0], sizes = [8, 10], strides = [1, 1]} : vector<8x32xf32> to vector<8x10xf32>
    %cst_27 = arith.constant dense<0xFF800000> : vector<8xf32>
    %41 = vector.multi_reduction <maximumf>, %40, %cst_27 [1] : vector<8x10xf32> to vector<8xf32>
    %42 = vector.shape_cast %41 : vector<8xf32> to vector<8x1xf32>
    %43 = vector.extract_strided_slice %24 {offsets = [0, 10], sizes = [8, 10], strides = [1, 1]} : vector<8x32xf32> to vector<8x10xf32>
    %cst_28 = arith.constant dense<0xFF800000> : vector<8xf32>
    %44 = vector.multi_reduction <maximumf>, %43, %cst_28 [1] : vector<8x10xf32> to vector<8xf32>
    %45 = vector.shape_cast %44 : vector<8xf32> to vector<8x1xf32>
    %46 = arith.cmpf ogt, %45, %42 : vector<8x1xf32>
    %47 = vector.extract_strided_slice %32 {offsets = [0, 0], sizes = [8, 10], strides = [1, 1]} : vector<8x32xf32> to vector<8x10xf32>
    %cst_29 = arith.constant dense<0xFF800000> : vector<8xf32>
    %48 = vector.multi_reduction <maximumf>, %47, %cst_29 [1] : vector<8x10xf32> to vector<8xf32>
    %49 = vector.shape_cast %48 : vector<8xf32> to vector<8x1xf32>
    %50 = vector.extract_strided_slice %32 {offsets = [0, 10], sizes = [8, 10], strides = [1, 1]} : vector<8x32xf32> to vector<8x10xf32>
    %cst_30 = arith.constant dense<0xFF800000> : vector<8xf32>
    %51 = vector.multi_reduction <maximumf>, %50, %cst_30 [1] : vector<8x10xf32> to vector<8xf32>
    %52 = vector.shape_cast %51 : vector<8xf32> to vector<8x1xf32>
    %53 = arith.cmpf ogt, %52, %49 : vector<8x1xf32>
    %54 = arith.addf %16, %24 : vector<8x32xf32>
    %55 = arith.addf %54, %32 : vector<8x32xf32>
    %cst_31 = arith.constant 0.333333343 : f32
    %56 = vector.broadcast %cst_31 : f32 to vector<8x32xf32>
    %57 = arith.mulf %55, %56 : vector<8x32xf32>
    %58 = vector.shape_cast %39 : vector<8x1xi1> to vector<8x1xi1>
    %59 = vector.broadcast %58 : vector<8x1xi1> to vector<8x32xi1>
    %60 = arith.select %59, %16, %57 : vector<8x32xi1>, vector<8x32xf32>
    %61 = vector.shape_cast %46 : vector<8x1xi1> to vector<8x1xi1>
    %62 = vector.broadcast %61 : vector<8x1xi1> to vector<8x32xi1>
    %63 = arith.select %62, %24, %60 : vector<8x32xi1>, vector<8x32xf32>
    %64 = vector.shape_cast %53 : vector<8x1xi1> to vector<8x1xi1>
    %65 = vector.broadcast %64 : vector<8x1xi1> to vector<8x32xi1>
    %66 = arith.select %65, %32, %63 : vector<8x32xi1>, vector<8x32xf32>
    %c0_32 = arith.constant 0 : index
    %c0_33 = arith.constant 0 : index
    %67 = vector.load %arg6[%c0_32, %c0_33] : memref<8x32xf32, #tpu.memory_space<vmem>>, vector<8x32xf32>
    tpu.vector_store %arg6[%c0_32, %c0_33], %66 {strides = array<i32>} : memref<8x32xf32, #tpu.memory_space<vmem>>, vector<8x32xf32>,
    return
  }
  func.func @transform_0(%arg0: i32) -> (i32, i32) {
    %c0_i32 = arith.constant 0 : i32
    %c0_i32_0 = arith.constant 0 : i32
    return %arg0, %c0_i32 : i32, i32
  }
  func.func @transform_1(%arg0: i32) -> (i32, i32) {
    %c0_i32 = arith.constant 0 : i32
    %c0_i32_0 = arith.constant 0 : i32
    %c0_i32_1 = arith.constant 0 : i32
    return %c0_i32, %c0_i32_0 : i32, i32
  }
  func.func @transform_2(%arg0: i32) -> (i32, i32) {
    %c0_i32 = arith.constant 0 : i32
    %c0_i32_0 = arith.constant 0 : i32
    %c0_i32_1 = arith.constant 0 : i32
    return %c0_i32, %c0_i32_0 : i32, i32
  }
  func.func @transform_3(%arg0: i32) -> (i32, i32, i32) {
    %c0_i32 = arith.constant 0 : i32
    %c0_i32_0 = arith.constant 0 : i32
    %c0_i32_1 = arith.constant 0 : i32
    %c0_i32_2 = arith.constant 0 : i32
    return %c0_i32, %c0_i32_0, %c0_i32_1 : i32, i32, i32
  }
  func.func @transform_4(%arg0: i32) -> (i32, i32, i32) {
    %c0_i32 = arith.constant 0 : i32
    %c0_i32_0 = arith.constant 0 : i32
    %c0_i32_1 = arith.constant 0 : i32
    %c0_i32_2 = arith.constant 0 : i32
    return %c0_i32, %c0_i32_0, %c0_i32_1 : i32, i32, i32
  }
  func.func @transform_5(%arg0: i32) -> (i32, i32) {
    %c0_i32 = arith.constant 0 : i32
    %c0_i32_0 = arith.constant 0 : i32
    return %arg0, %c0_i32 : i32, i32
  }
}

</mosaic_0001>

<llo_original>
// kernel: tpu_custom_call.1
$region0: #{tpu_custom_call.1}
  #allocation0 [shape = 'u32[]', space=smem, size = 0x4, offset = 0x4, fixed_abs, tag = 'smem constant byte address 0x4 - core index']
  #allocation1 [shape = 'u32[72,128]{1,0:T(1,128)}', space=vmem, size = 0x9000, scoped, tag = 'internal scratch']
  %s0 = inlined_call_operand.vmem [shape: bf16[8,784], index: 0, kind: input, shape index: {}]
  %s1 = inlined_call_operand.hbm [shape: bf16[784,384], index: 1, kind: input, shape index: {}]
  %s2 = inlined_call_operand.vmem [shape: f32[1,384], index: 2, kind: input, shape index: {}]
  %s3 = inlined_call_operand.vmem [shape: bf16[3,128,32], index: 3, kind: input, shape index: {}]
  %s4 = inlined_call_operand.vmem [shape: f32[3,1,32], index: 4, kind: input, shape index: {}]
  %s5 = inlined_call_operand.hbm [shape: f32[8,32], index: 5, kind: output, shape index: {}]
  %s6 = sld [smem:[#allocation0]]
  $region34: #{tpu_custom_call.1} parent=0
    _
  %s8 = ssub.s32 1, %s6
  %s9 = scalar_select 0, %s8, %s6
  $region1: #{tpu_custom_call.1} parent=0
    #allocation2 [shape = 'u8[602112]{0}', space=vmem, size = 0x93000, scoped, tag = 'input window, operand 1, single buffered']
    #allocation3 [shape = 's32[1]{0}', space=sflag, size = 0x4, scoped, tag = 'scoped memory for tpu_custom_call.1']
    #allocation4 [shape = 's32[1]{0}', space=sflag, size = 0x4, scoped, tag = 'scoped memory for tpu_custom_call.1']
    #allocation5 [shape = 'u8[4096]{0}', space=vmem, size = 0x1000, scoped, tag = 'output window, operand 0, single buffered']
    %10 = vsyncpa [#allocation3], 0
    %11 = vsyncpa [#allocation4], 0
    // Predicated region
    $region2: #{tpu_custom_call.1} parent=1 // pred_check
      _
    $region3: #{tpu_custom_call.1} parent=1 // pred_check_branch
      %13 = sbr.rel (0) target = $region5
    $region4: #{tpu_custom_call.1} parent=1 // pred_region
      _
    $region5: #{tpu_custom_call.1} parent=1 // pred_fallthru
      _
    // Predicated region
    $region6: #{tpu_custom_call.1} parent=1 // pred_check
      _
    $region7: #{tpu_custom_call.1} parent=1 // pred_check_branch
      %15 = sbr.rel (0) target = $region9
    $region8: #{tpu_custom_call.1} parent=1 // pred_region
      %17 = vsyncadd [#allocation3], 0
      %s18 = sshll.u32 %s1, 4
      %s19 = int_to_ptr.hbm [resolvable:$true] %s18
      %s20 = sshll.u32 [#allocation2], 4
      %s21 = int_to_ptr.vmem [resolvable:$true] %s20
      %26 = dma.hbm_to_vmem [thread:$0]  %s19, 18816, %s21, [#allocation3], 192, 192, 12
    $region9: #{tpu_custom_call.1} parent=1 // pred_fallthru
      _
    // Predicated region
    $region10: #{tpu_custom_call.1} parent=1 // pred_check
      _
    $region11: #{tpu_custom_call.1} parent=1 // pred_check_branch
      %28 = sbr.rel (0) target = $region13
    $region12: #{tpu_custom_call.1} parent=1 // pred_region
      _
    $region13: #{tpu_custom_call.1} parent=1 // pred_fallthru
      _
    // Predicated region
    $region14: #{tpu_custom_call.1} parent=1 // pred_check
      _
    $region15: #{tpu_custom_call.1} parent=1 // pred_check_branch
      %30 = sbr.rel (0) target = $region17
    $region16: #{tpu_custom_call.1} parent=1 // pred_region
      _
    $region17: #{tpu_custom_call.1} parent=1 // pred_fallthru
      _
    // Predicated region
    $region18: #{tpu_custom_call.1} parent=1 // pred_check
      _
    $region19: #{tpu_custom_call.1} parent=1 // pred_check_branch
      %32 = sbr.rel (0) target = $region21
    $region20: #{tpu_custom_call.1} parent=1 // pred_region
      _
    $region21: #{tpu_custom_call.1} parent=1 // pred_fallthru
      _
    // Predicated region
    $region22: #{tpu_custom_call.1} parent=1 // pred_check
      _
    $region23: #{tpu_custom_call.1} parent=1 // pred_check_branch
      %34 = sbr.rel (0) target = $region25
    $region24: #{tpu_custom_call.1} parent=1 // pred_region
      %36 = dma.done [#allocation3], 18816
    $region25: #{tpu_custom_call.1} parent=1 // pred_fallthru
      _
    %v38 = vld [vmem:[%s0] sm:$0xff]
    %v39 = vld [vmem:[%s0 + $0x8] sm:$0xff]
    %v40 = vld [vmem:[%s0 + $0x10] sm:$0xff]
    %v41 = vld [vmem:[%s0 + $0x18] sm:$0xf]
    %v42 = vld [vmem:[#allocation2] sm:$0xff]
    %v43 = vld [vmem:[#allocation2 + $0x8] sm:$0xf]
    %v44 = vld [vmem:[#allocation2 + $0xc] sm:$0xff]
    %v45 = vld [vmem:[#allocation2 + $0x14] sm:$0xf]
    %v46 = vld [vmem:[#allocation2 + $0x18] sm:$0xff]
    %v47 = vld [vmem:[#allocation2 + $0x20] sm:$0xf]
    %v48 = vld [vmem:[#allocation2 + $0x24] sm:$0xff]
    %v49 = vld [vmem:[#allocation2 + $0x2c] sm:$0xf]
    %v50 = vld [vmem:[#allocation2 + $0x30] sm:$0xff]
    %v51 = vld [vmem:[#allocation2 + $0x38] sm:$0xf]
    %v52 = vld [vmem:[#allocation2 + $0x3c] sm:$0xff]
    %v53 = vld [vmem:[#allocation2 + $0x44] sm:$0xf]
    %v54 = vld [vmem:[#allocation2 + $0x48] sm:$0xff]
    %v55 = vld [vmem:[#allocation2 + $0x50] sm:$0xf]
    %v56 = vld [vmem:[#allocation2 + $0x54] sm:$0xff]
    %v57 = vld [vmem:[#allocation2 + $0x5c] sm:$0xf]
    %v58 = vld [vmem:[#allocation2 + $0x60] sm:$0xff]
    %v59 = vld [vmem:[#allocation2 + $0x68] sm:$0xf]
    %v60 = vld [vmem:[#allocation2 + $0x6c] sm:$0xff]
    %v61 = vld [vmem:[#allocation2 + $0x74] sm:$0xf]
    %v62 = vld [vmem:[#allocation2 + $0x78] sm:$0xff]
    %v63 = vld [vmem:[#allocation2 + $0x80] sm:$0xf]
    %v64 = vld [vmem:[#allocation2 + $0x84] sm:$0xff]
    %v65 = vld [vmem:[#allocation2 + $0x8c] sm:$0xf]
    %v66 = vld [vmem:[#allocation2 + $0x90] sm:$0xff]
    %v67 = vld [vmem:[#allocation2 + $0x98] sm:$0xf]
    %v68 = vld [vmem:[#allocation2 + $0x9c] sm:$0xff]
    %v69 = vld [vmem:[#allocation2 + $0xa4] sm:$0xf]
    %v70 = vld [vmem:[#allocation2 + $0xa8] sm:$0xff]
    %v71 = vld [vmem:[#allocation2 + $0xb0] sm:$0xf]
    %v72 = vld [vmem:[#allocation2 + $0xb4] sm:$0xff]
    %v73 = vld [vmem:[#allocation2 + $0xbc] sm:$0xf]
    %v74 = vld [vmem:[#allocation2 + $0xc0] sm:$0xff]
    %v75 = vld [vmem:[#allocation2 + $0xc8] sm:$0xf]
    %v76 = vld [vmem:[#allocation2 + $0xcc] sm:$0xff]
    %v77 = vld [vmem:[#allocation2 + $0xd4] sm:$0xf]
    %v78 = vld [vmem:[#allocation2 + $0xd8] sm:$0xff]
    %v79 = vld [vmem:[#allocation2 + $0xe0] sm:$0xf]
    %v80 = vld [vmem:[#allocation2 + $0xe4] sm:$0xff]
    %v81 = vld [vmem:[#allocation2 + $0xec] sm:$0xf]
    %v82 = vld [vmem:[#allocation2 + $0xf0] sm:$0xff]
    %v83 = vld [vmem:[#allocation2 + $0xf8] sm:$0xf]
    %v84 = vld [vmem:[#allocation2 + $0xfc] sm:$0xff]
    %v85 = vld [vmem:[#allocation2 + $0x104] sm:$0xf]
    %v86 = vld [vmem:[#allocation2 + $0x108] sm:$0xff]
    %v87 = vld [vmem:[#allocation2 + $0x110] sm:$0xf]
    %v88 = vld [vmem:[#allocation2 + $0x114] sm:$0xff]
    %v89 = vld [vmem:[#allocation2 + $0x11c] sm:$0xf]
    %v90 = vld [vmem:[#allocation2 + $0x120] sm:$0xff]
    %v91 = vld [vmem:[#allocation2 + $0x128] sm:$0xf]
    %v92 = vld [vmem:[#allocation2 + $0x12c] sm:$0xff]
    %v93 = vld [vmem:[#allocation2 + $0x134] sm:$0xf]
    %v94 = vld [vmem:[#allocation2 + $0x138] sm:$0xff]
    %v95 = vld [vmem:[#allocation2 + $0x140] sm:$0xf]
    %v96 = vld [vmem:[#allocation2 + $0x144] sm:$0xff]
    %v97 = vld [vmem:[#allocation2 + $0x14c] sm:$0xf]
    %v98 = vld [vmem:[#allocation2 + $0x150] sm:$0xff]
    %v99 = vld [vmem:[#allocation2 + $0x158] sm:$0xf]
    %v100 = vld [vmem:[#allocation2 + $0x15c] sm:$0xff]
    %v101 = vld [vmem:[#allocation2 + $0x164] sm:$0xf]
    %v102 = vld [vmem:[#allocation2 + $0x168] sm:$0xff]
    %v103 = vld [vmem:[#allocation2 + $0x170] sm:$0xf]
    %v104 = vld [vmem:[#allocation2 + $0x174] sm:$0xff]
    %v105 = vld [vmem:[#allocation2 + $0x17c] sm:$0xf]
    %v106 = vld [vmem:[#allocation2 + $0x180] sm:$0xff]
    %v107 = vld [vmem:[#allocation2 + $0x188] sm:$0xf]
    %v108 = vld [vmem:[#allocation2 + $0x18c] sm:$0xff]
    %v109 = vld [vmem:[#allocation2 + $0x194] sm:$0xf]
    %v110 = vld [vmem:[#allocation2 + $0x198] sm:$0xff]
    %v111 = vld [vmem:[#allocation2 + $0x1a0] sm:$0xf]
    %v112 = vld [vmem:[#allocation2 + $0x1a4] sm:$0xff]
    %v113 = vld [vmem:[#allocation2 + $0x1ac] sm:$0xf]
    %v114 = vld [vmem:[#allocation2 + $0x1b0] sm:$0xff]
    %v115 = vld [vmem:[#allocation2 + $0x1b8] sm:$0xf]
    %v116 = vld [vmem:[#allocation2 + $0x1bc] sm:$0xff]
    %v117 = vld [vmem:[#allocation2 + $0x1c4] sm:$0xf]
    %v118 = vld [vmem:[#allocation2 + $0x1c8] sm:$0xff]
    %v119 = vld [vmem:[#allocation2 + $0x1d0] sm:$0xf]
    %v120 = vld [vmem:[#allocation2 + $0x1d4] sm:$0xff]
    %v121 = vld [vmem:[#allocation2 + $0x1dc] sm:$0xf]
    %v122 = vld [vmem:[#allocation2 + $0x1e0] sm:$0xff]
    %v123 = vld [vmem:[#allocation2 + $0x1e8] sm:$0xf]
    %v124 = vld [vmem:[#allocation2 + $0x1ec] sm:$0xff]
    %v125 = vld [vmem:[#allocation2 + $0x1f4] sm:$0xf]
    %v126 = vld [vmem:[#allocation2 + $0x1f8] sm:$0xff]
    %v127 = vld [vmem:[#allocation2 + $0x200] sm:$0xf]
    %v128 = vld [vmem:[#allocation2 + $0x204] sm:$0xff]
    %v129 = vld [vmem:[#allocation2 + $0x20c] sm:$0xf]
    %v130 = vld [vmem:[#allocation2 + $0x210] sm:$0xff]
    %v131 = vld [vmem:[#allocation2 + $0x218] sm:$0xf]
    %v132 = vld [vmem:[#allocation2 + $0x21c] sm:$0xff]
    %v133 = vld [vmem:[#allocation2 + $0x224] sm:$0xf]
    %v134 = vld [vmem:[#allocation2 + $0x228] sm:$0xff]
    %v135 = vld [vmem:[#allocation2 + $0x230] sm:$0xf]
    %v136 = vld [vmem:[#allocation2 + $0x234] sm:$0xff]
    %v137 = vld [vmem:[#allocation2 + $0x23c] sm:$0xf]
    %v138 = vld [vmem:[#allocation2 + $0x240] sm:$0xff]
    %v139 = vld [vmem:[#allocation2 + $0x248] sm:$0xf]
    %v140 = vld [vmem:[#allocation2 + $0x24c] sm:$0xff]
    %v141 = vld [vmem:[#allocation2 + $0x254] sm:$0xf]
    %v142 = vld [vmem:[#allocation2 + $0x258] sm:$0xff]
    %v143 = vld [vmem:[#allocation2 + $0x260] sm:$0xf]
    %v144 = vld [vmem:[#allocation2 + $0x264] sm:$0xff]
    %v145 = vld [vmem:[#allocation2 + $0x26c] sm:$0xf]
    %v146 = vld [vmem:[#allocation2 + $0x270] sm:$0xff]
    %v147 = vld [vmem:[#allocation2 + $0x278] sm:$0xf]
    %v148 = vld [vmem:[#allocation2 + $0x27c] sm:$0xff]
    %v149 = vld [vmem:[#allocation2 + $0x284] sm:$0xf]
    %v150 = vld [vmem:[#allocation2 + $0x288] sm:$0xff]
    %v151 = vld [vmem:[#allocation2 + $0x290] sm:$0xf]
    %v152 = vld [vmem:[#allocation2 + $0x294] sm:$0xff]
    %v153 = vld [vmem:[#allocation2 + $0x29c] sm:$0xf]
    %v154 = vld [vmem:[#allocation2 + $0x2a0] sm:$0xff]
    %v155 = vld [vmem:[#allocation2 + $0x2a8] sm:$0xf]
    %v156 = vld [vmem:[#allocation2 + $0x2ac] sm:$0xff]
    %v157 = vld [vmem:[#allocation2 + $0x2b4] sm:$0xf]
    %v158 = vld [vmem:[#allocation2 + $0x2b8] sm:$0xff]
    %v159 = vld [vmem:[#allocation2 + $0x2c0] sm:$0xf]
    %v160 = vld [vmem:[#allocation2 + $0x2c4] sm:$0xff]
    %v161 = vld [vmem:[#allocation2 + $0x2cc] sm:$0xf]
    %v162 = vld [vmem:[#allocation2 + $0x2d0] sm:$0xff]
    %v163 = vld [vmem:[#allocation2 + $0x2d8] sm:$0xf]
    %v164 = vld [vmem:[#allocation2 + $0x2dc] sm:$0xff]
    %v165 = vld [vmem:[#allocation2 + $0x2e4] sm:$0xf]
    %v166 = vld [vmem:[#allocation2 + $0x2e8] sm:$0xff]
    %v167 = vld [vmem:[#allocation2 + $0x2f0] sm:$0xf]
    %v168 = vld [vmem:[#allocation2 + $0x2f4] sm:$0xff]
    %v169 = vld [vmem:[#allocation2 + $0x2fc] sm:$0xf]
    %v170 = vld [vmem:[#allocation2 + $0x300] sm:$0xff]
    %v171 = vld [vmem:[#allocation2 + $0x308] sm:$0xf]
    %v172 = vld [vmem:[#allocation2 + $0x30c] sm:$0xff]
    %v173 = vld [vmem:[#allocation2 + $0x314] sm:$0xf]
    %v174 = vld [vmem:[#allocation2 + $0x318] sm:$0xff]
    %v175 = vld [vmem:[#allocation2 + $0x320] sm:$0xf]
    %v176 = vld [vmem:[#allocation2 + $0x324] sm:$0xff]
    %v177 = vld [vmem:[#allocation2 + $0x32c] sm:$0xf]
    %v178 = vld [vmem:[#allocation2 + $0x330] sm:$0xff]
    %v179 = vld [vmem:[#allocation2 + $0x338] sm:$0xf]
    %v180 = vld [vmem:[#allocation2 + $0x33c] sm:$0xff]
    %v181 = vld [vmem:[#allocation2 + $0x344] sm:$0xf]
    %v182 = vld [vmem:[#allocation2 + $0x348] sm:$0xff]
    %v183 = vld [vmem:[#allocation2 + $0x350] sm:$0xf]
    %v184 = vld [vmem:[#allocation2 + $0x354] sm:$0xff]
    %v185 = vld [vmem:[#allocation2 + $0x35c] sm:$0xf]
    %v186 = vld [vmem:[#allocation2 + $0x360] sm:$0xff]
    %v187 = vld [vmem:[#allocation2 + $0x368] sm:$0xf]
    %v188 = vld [vmem:[#allocation2 + $0x36c] sm:$0xff]
    %v189 = vld [vmem:[#allocation2 + $0x374] sm:$0xf]
    %v190 = vld [vmem:[#allocation2 + $0x378] sm:$0xff]
    %v191 = vld [vmem:[#allocation2 + $0x380] sm:$0xf]
    %v192 = vld [vmem:[#allocation2 + $0x384] sm:$0xff]
    %v193 = vld [vmem:[#allocation2 + $0x38c] sm:$0xf]
    %v194 = vld [vmem:[#allocation2 + $0x390] sm:$0xff]
    %v195 = vld [vmem:[#allocation2 + $0x398] sm:$0xf]
    %v196 = vld [vmem:[#allocation2 + $0x39c] sm:$0xff]
    %v197 = vld [vmem:[#allocation2 + $0x3a4] sm:$0xf]
    %v198 = vld [vmem:[#allocation2 + $0x3a8] sm:$0xff]
    %v199 = vld [vmem:[#allocation2 + $0x3b0] sm:$0xf]
    %v200 = vld [vmem:[#allocation2 + $0x3b4] sm:$0xff]
    %v201 = vld [vmem:[#allocation2 + $0x3bc] sm:$0xf]
    %v202 = vld [vmem:[#allocation2 + $0x3c0] sm:$0xff]
    %v203 = vld [vmem:[#allocation2 + $0x3c8] sm:$0xf]
    %v204 = vld [vmem:[#allocation2 + $0x3cc] sm:$0xff]
    %v205 = vld [vmem:[#allocation2 + $0x3d4] sm:$0xf]
    %v206 = vld [vmem:[#allocation2 + $0x3d8] sm:$0xff]
    %v207 = vld [vmem:[#allocation2 + $0x3e0] sm:$0xf]
    %v208 = vld [vmem:[#allocation2 + $0x3e4] sm:$0xff]
    %v209 = vld [vmem:[#allocation2 + $0x3ec] sm:$0xf]
    %v210 = vld [vmem:[#allocation2 + $0x3f0] sm:$0xff]
    %v211 = vld [vmem:[#allocation2 + $0x3f8] sm:$0xf]
    %v212 = vld [vmem:[#allocation2 + $0x3fc] sm:$0xff]
    %v213 = vld [vmem:[#allocation2 + $0x404] sm:$0xf]
    %v214 = vld [vmem:[#allocation2 + $0x408] sm:$0xff]
    %v215 = vld [vmem:[#allocation2 + $0x410] sm:$0xf]
    %v216 = vld [vmem:[#allocation2 + $0x414] sm:$0xff]
    %v217 = vld [vmem:[#allocation2 + $0x41c] sm:$0xf]
    %v218 = vld [vmem:[#allocation2 + $0x420] sm:$0xff]
    %v219 = vld [vmem:[#allocation2 + $0x428] sm:$0xf]
    %v220 = vld [vmem:[#allocation2 + $0x42c] sm:$0xff]
    %v221 = vld [vmem:[#allocation2 + $0x434] sm:$0xf]
    %v222 = vld [vmem:[#allocation2 + $0x438] sm:$0xff]
    %v223 = vld [vmem:[#allocation2 + $0x440] sm:$0xf]
    %v224 = vld [vmem:[#allocation2 + $0x444] sm:$0xff]
    %v225 = vld [vmem:[#allocation2 + $0x44c] sm:$0xf]
    %v226 = vld [vmem:[#allocation2 + $0x450] sm:$0xff]
    %v227 = vld [vmem:[#allocation2 + $0x458] sm:$0xf]
    %v228 = vld [vmem:[#allocation2 + $0x45c] sm:$0xff]
    %v229 = vld [vmem:[#allocation2 + $0x464] sm:$0xf]
    %v230 = vld [vmem:[#allocation2 + $0x468] sm:$0xff]
    %v231 = vld [vmem:[#allocation2 + $0x470] sm:$0xf]
    %v232 = vld [vmem:[#allocation2 + $0x474] sm:$0xff]
    %v233 = vld [vmem:[#allocation2 + $0x47c] sm:$0xf]
    %v234 = vld [vmem:[#allocation2 + $0x480] sm:$0xff]
    %v235 = vld [vmem:[#allocation2 + $0x488] sm:$0xf]
    %v236 = vld [vmem:[#allocation2 + $0x48c] sm:$0xff]
    %v237 = vld [vmem:[#allocation2 + $0x494] sm:$0xf]
    %v238 = vld [vmem:[%s2] sm:$0x7]
    %v240 = vperm.slane %v238, 0
    %v241 = vperm.slane %v238, 1
    %v242 = vperm.slane %v238, 2
    %v250 = vunpack.c.l.b16 %v38
    %v251 = vunpack.c.h.b16 %v38
    %v252 = vunpack.c.l.b16 %v39
    %v253 = vunpack.c.h.b16 %v39
    %v254 = vunpack.c.l.b16 %v40
    %v255 = vunpack.c.h.b16 %v40
    %v256 = vunpack.c.l.b16 %v41
    %v257 = vpack.c.b16 %v250, %v250
    %v258 = vpack.c.b16 %v251, %v251
    %v259 = vpack.c.b16 %v252, %v252
    %v260 = vpack.c.b16 %v253, %v253
    %v261 = vpack.c.b16 %v254, %v254
    %v262 = vpack.c.b16 %v255, %v255
    %v263 = vpack.c.b16 %v256, %v256
    %v466 = vunpack.c.l.b16 %v42
    %v467 = vunpack.c.h.b16 %v42
    %v468 = vunpack.c.l.b16 %v43
    %v469 = vunpack.c.l.b16 %v44
    %v470 = vunpack.c.h.b16 %v44
    %v471 = vunpack.c.l.b16 %v45
    %v472 = vunpack.c.l.b16 %v46
    %v473 = vunpack.c.h.b16 %v46
    %v474 = vunpack.c.l.b16 %v47
    %v475 = vunpack.c.l.b16 %v48
    %v476 = vunpack.c.h.b16 %v48
    %v477 = vunpack.c.l.b16 %v49
    %v478 = vunpack.c.l.b16 %v50
    %v479 = vunpack.c.h.b16 %v50
    %v480 = vunpack.c.l.b16 %v51
    %v481 = vunpack.c.l.b16 %v52
    %v482 = vunpack.c.h.b16 %v52
    %v483 = vunpack.c.l.b16 %v53
    %v484 = vunpack.c.l.b16 %v54
    %v485 = vunpack.c.h.b16 %v54
    %v486 = vunpack.c.l.b16 %v55
    %v487 = vunpack.c.l.b16 %v56
    %v488 = vunpack.c.h.b16 %v56
    %v489 = vunpack.c.l.b16 %v57
    %v490 = vunpack.c.l.b16 %v58
    %v491 = vunpack.c.h.b16 %v58
    %v492 = vunpack.c.l.b16 %v59
    %v493 = vunpack.c.l.b16 %v60
    %v494 = vunpack.c.h.b16 %v60
    %v495 = vunpack.c.l.b16 %v61
    %v496 = vunpack.c.l.b16 %v62
    %v497 = vunpack.c.h.b16 %v62
    %v498 = vunpack.c.l.b16 %v63
    %v499 = vunpack.c.l.b16 %v64
    %v500 = vunpack.c.h.b16 %v64
    %v501 = vunpack.c.l.b16 %v65
    %v502 = vunpack.c.l.b16 %v66
    %v503 = vunpack.c.h.b16 %v66
    %v504 = vunpack.c.l.b16 %v67
    %v505 = vunpack.c.l.b16 %v68
    %v506 = vunpack.c.h.b16 %v68
    %v507 = vunpack.c.l.b16 %v69
    %v508 = vunpack.c.l.b16 %v70
    %v509 = vunpack.c.h.b16 %v70
    %v510 = vunpack.c.l.b16 %v71
    %v511 = vunpack.c.l.b16 %v72
    %v512 = vunpack.c.h.b16 %v72
    %v513 = vunpack.c.l.b16 %v73
    %v514 = vunpack.c.l.b16 %v74
    %v515 = vunpack.c.h.b16 %v74
    %v516 = vunpack.c.l.b16 %v75
    %v517 = vunpack.c.l.b16 %v76
    %v518 = vunpack.c.h.b16 %v76
    %v519 = vunpack.c.l.b16 %v77
    %v520 = vunpack.c.l.b16 %v78
    %v521 = vunpack.c.h.b16 %v78
    %v522 = vunpack.c.l.b16 %v79
    %v523 = vunpack.c.l.b16 %v80
    %v524 = vunpack.c.h.b16 %v80
    %v525 = vunpack.c.l.b16 %v81
    %v526 = vunpack.c.l.b16 %v82
    %v527 = vunpack.c.h.b16 %v82
    %v528 = vunpack.c.l.b16 %v83
    %v529 = vunpack.c.l.b16 %v84
    %v530 = vunpack.c.h.b16 %v84
    %v531 = vunpack.c.l.b16 %v85
    %v532 = vunpack.c.l.b16 %v86
    %v533 = vunpack.c.h.b16 %v86
    %v534 = vunpack.c.l.b16 %v87
    %v535 = vunpack.c.l.b16 %v88
    %v536 = vunpack.c.h.b16 %v88
    %v537 = vunpack.c.l.b16 %v89
    %v538 = vunpack.c.l.b16 %v90
    %v539 = vunpack.c.h.b16 %v90
    %v540 = vunpack.c.l.b16 %v91
    %v541 = vunpack.c.l.b16 %v92
    %v542 = vunpack.c.h.b16 %v92
    %v543 = vunpack.c.l.b16 %v93
    %v544 = vunpack.c.l.b16 %v94
    %v545 = vunpack.c.h.b16 %v94
    %v546 = vunpack.c.l.b16 %v95
    %v547 = vunpack.c.l.b16 %v96
    %v548 = vunpack.c.h.b16 %v96
    %v549 = vunpack.c.l.b16 %v97
    %v550 = vunpack.c.l.b16 %v98
    %v551 = vunpack.c.h.b16 %v98
    %v552 = vunpack.c.l.b16 %v99
    %v553 = vunpack.c.l.b16 %v100
    %v554 = vunpack.c.h.b16 %v100
    %v555 = vunpack.c.l.b16 %v101
    %v556 = vunpack.c.l.b16 %v102
    %v557 = vunpack.c.h.b16 %v102
    %v558 = vunpack.c.l.b16 %v103
    %v559 = vunpack.c.l.b16 %v104
    %v560 = vunpack.c.h.b16 %v104
    %v561 = vunpack.c.l.b16 %v105
    %v562 = vunpack.c.l.b16 %v106
    %v563 = vunpack.c.h.b16 %v106
    %v564 = vunpack.c.l.b16 %v107
    %v565 = vunpack.c.l.b16 %v108
    %v566 = vunpack.c.h.b16 %v108
    %v567 = vunpack.c.l.b16 %v109
    %v568 = vunpack.c.l.b16 %v110
    %v569 = vunpack.c.h.b16 %v110
    %v570 = vunpack.c.l.b16 %v111
    %v571 = vunpack.c.l.b16 %v112
    %v572 = vunpack.c.h.b16 %v112
    %v573 = vunpack.c.l.b16 %v113
    %v574 = vunpack.c.l.b16 %v114
    %v575 = vunpack.c.h.b16 %v114
    %v576 = vunpack.c.l.b16 %v115
    %v577 = vunpack.c.l.b16 %v116
    %v578 = vunpack.c.h.b16 %v116
    %v579 = vunpack.c.l.b16 %v117
    %v580 = vunpack.c.l.b16 %v118
    %v581 = vunpack.c.h.b16 %v118
    %v582 = vunpack.c.l.b16 %v119
    %v583 = vunpack.c.l.b16 %v120
    %v584 = vunpack.c.h.b16 %v120
    %v585 = vunpack.c.l.b16 %v121
    %v586 = vunpack.c.l.b16 %v122
    %v587 = vunpack.c.h.b16 %v122
    %v588 = vunpack.c.l.b16 %v123
    %v589 = vunpack.c.l.b16 %v124
    %v590 = vunpack.c.h.b16 %v124
    %v591 = vunpack.c.l.b16 %v125
    %v592 = vunpack.c.l.b16 %v126
    %v593 = vunpack.c.h.b16 %v126
    %v594 = vunpack.c.l.b16 %v127
    %v595 = vunpack.c.l.b16 %v128
    %v596 = vunpack.c.h.b16 %v128
    %v597 = vunpack.c.l.b16 %v129
    %v598 = vunpack.c.l.b16 %v130
    %v599 = vunpack.c.h.b16 %v130
    %v600 = vunpack.c.l.b16 %v131
    %v601 = vunpack.c.l.b16 %v132
    %v602 = vunpack.c.h.b16 %v132
    %v603 = vunpack.c.l.b16 %v133
    %v604 = vunpack.c.l.b16 %v134
    %v605 = vunpack.c.h.b16 %v134
    %v606 = vunpack.c.l.b16 %v135
    %v607 = vunpack.c.l.b16 %v136
    %v608 = vunpack.c.h.b16 %v136
    %v609 = vunpack.c.l.b16 %v137
    %v610 = vunpack.c.l.b16 %v138
    %v611 = vunpack.c.h.b16 %v138
    %v612 = vunpack.c.l.b16 %v139
    %v613 = vunpack.c.l.b16 %v140
    %v614 = vunpack.c.h.b16 %v140
    %v615 = vunpack.c.l.b16 %v141
    %v616 = vunpack.c.l.b16 %v142
    %v617 = vunpack.c.h.b16 %v142
    %v618 = vunpack.c.l.b16 %v143
    %v619 = vunpack.c.l.b16 %v144
    %v620 = vunpack.c.h.b16 %v144
    %v621 = vunpack.c.l.b16 %v145
    %v622 = vunpack.c.l.b16 %v146
    %v623 = vunpack.c.h.b16 %v146
    %v624 = vunpack.c.l.b16 %v147
    %v625 = vunpack.c.l.b16 %v148
    %v626 = vunpack.c.h.b16 %v148
    %v627 = vunpack.c.l.b16 %v149
    %v628 = vunpack.c.l.b16 %v150
    %v629 = vunpack.c.h.b16 %v150
    %v630 = vunpack.c.l.b16 %v151
    %v631 = vunpack.c.l.b16 %v152
    %v632 = vunpack.c.h.b16 %v152
    %v633 = vunpack.c.l.b16 %v153
    %v634 = vunpack.c.l.b16 %v154
    %v635 = vunpack.c.h.b16 %v154
    %v636 = vunpack.c.l.b16 %v155
    %v637 = vunpack.c.l.b16 %v156
    %v638 = vunpack.c.h.b16 %v156
    %v639 = vunpack.c.l.b16 %v157
    %v640 = vunpack.c.l.b16 %v158
    %v641 = vunpack.c.h.b16 %v158
    %v642 = vunpack.c.l.b16 %v159
    %v643 = vunpack.c.l.b16 %v160
    %v644 = vunpack.c.h.b16 %v160
    %v645 = vunpack.c.l.b16 %v161
    %v646 = vunpack.c.l.b16 %v162
    %v647 = vunpack.c.h.b16 %v162
    %v648 = vunpack.c.l.b16 %v163
    %v649 = vunpack.c.l.b16 %v164
    %v650 = vunpack.c.h.b16 %v164
    %v651 = vunpack.c.l.b16 %v165
    %v652 = vunpack.c.l.b16 %v166
    %v653 = vunpack.c.h.b16 %v166
    %v654 = vunpack.c.l.b16 %v167
    %v655 = vunpack.c.l.b16 %v168
    %v656 = vunpack.c.h.b16 %v168
    %v657 = vunpack.c.l.b16 %v169
    %v658 = vunpack.c.l.b16 %v170
    %v659 = vunpack.c.h.b16 %v170
    %v660 = vunpack.c.l.b16 %v171
    %v661 = vunpack.c.l.b16 %v172
    %v662 = vunpack.c.h.b16 %v172
    %v663 = vunpack.c.l.b16 %v173
    %v664 = vunpack.c.l.b16 %v174
    %v665 = vunpack.c.h.b16 %v174
    %v666 = vunpack.c.l.b16 %v175
    %v667 = vunpack.c.l.b16 %v176
    %v668 = vunpack.c.h.b16 %v176
    %v669 = vunpack.c.l.b16 %v177
    %v670 = vunpack.c.l.b16 %v178
    %v671 = vunpack.c.h.b16 %v178
    %v672 = vunpack.c.l.b16 %v179
    %v673 = vunpack.c.l.b16 %v180
    %v674 = vunpack.c.h.b16 %v180
    %v675 = vunpack.c.l.b16 %v181
    %v676 = vunpack.c.l.b16 %v182
    %v677 = vunpack.c.h.b16 %v182
    %v678 = vunpack.c.l.b16 %v183
    %v679 = vunpack.c.l.b16 %v184
    %v680 = vunpack.c.h.b16 %v184
    %v681 = vunpack.c.l.b16 %v185
    %v682 = vunpack.c.l.b16 %v186
    %v683 = vunpack.c.h.b16 %v186
    %v684 = vunpack.c.l.b16 %v187
    %v685 = vunpack.c.l.b16 %v188
    %v686 = vunpack.c.h.b16 %v188
    %v687 = vunpack.c.l.b16 %v189
    %v688 = vunpack.c.l.b16 %v190
    %v689 = vunpack.c.h.b16 %v190
    %v690 = vunpack.c.l.b16 %v191
    %v691 = vunpack.c.l.b16 %v192
    %v692 = vunpack.c.h.b16 %v192
    %v693 = vunpack.c.l.b16 %v193
    %v694 = vunpack.c.l.b16 %v194
    %v695 = vunpack.c.h.b16 %v194
    %v696 = vunpack.c.l.b16 %v195
    %v697 = vunpack.c.l.b16 %v196
    %v698 = vunpack.c.h.b16 %v196
    %v699 = vunpack.c.l.b16 %v197
    %v700 = vunpack.c.l.b16 %v198
    %v701 = vunpack.c.h.b16 %v198
    %v702 = vunpack.c.l.b16 %v199
    %v703 = vunpack.c.l.b16 %v200
    %v704 = vunpack.c.h.b16 %v200
    %v705 = vunpack.c.l.b16 %v201
    %v706 = vunpack.c.l.b16 %v202
    %v707 = vunpack.c.h.b16 %v202
    %v708 = vunpack.c.l.b16 %v203
    %v709 = vunpack.c.l.b16 %v204
    %v710 = vunpack.c.h.b16 %v204
    %v711 = vunpack.c.l.b16 %v205
    %v712 = vunpack.c.l.b16 %v206
    %v713 = vunpack.c.h.b16 %v206
    %v714 = vunpack.c.l.b16 %v207
    %v715 = vunpack.c.l.b16 %v208
    %v716 = vunpack.c.h.b16 %v208
    %v717 = vunpack.c.l.b16 %v209
    %v718 = vunpack.c.l.b16 %v210
    %v719 = vunpack.c.h.b16 %v210
    %v720 = vunpack.c.l.b16 %v211
    %v721 = vunpack.c.l.b16 %v212
    %v722 = vunpack.c.h.b16 %v212
    %v723 = vunpack.c.l.b16 %v213
    %v724 = vunpack.c.l.b16 %v214
    %v725 = vunpack.c.h.b16 %v214
    %v726 = vunpack.c.l.b16 %v215
    %v727 = vunpack.c.l.b16 %v216
    %v728 = vunpack.c.h.b16 %v216
    %v729 = vunpack.c.l.b16 %v217
    %v730 = vunpack.c.l.b16 %v218
    %v731 = vunpack.c.h.b16 %v218
    %v732 = vunpack.c.l.b16 %v219
    %v733 = vunpack.c.l.b16 %v220
    %v734 = vunpack.c.h.b16 %v220
    %v735 = vunpack.c.l.b16 %v221
    %v736 = vunpack.c.l.b16 %v222
    %v737 = vunpack.c.h.b16 %v222
    %v738 = vunpack.c.l.b16 %v223
    %v739 = vunpack.c.l.b16 %v224
    %v740 = vunpack.c.h.b16 %v224
    %v741 = vunpack.c.l.b16 %v225
    %v742 = vunpack.c.l.b16 %v226
    %v743 = vunpack.c.h.b16 %v226
    %v744 = vunpack.c.l.b16 %v227
    %v745 = vunpack.c.l.b16 %v228
    %v746 = vunpack.c.h.b16 %v228
    %v747 = vunpack.c.l.b16 %v229
    %v748 = vunpack.c.l.b16 %v230
    %v749 = vunpack.c.h.b16 %v230
    %v750 = vunpack.c.l.b16 %v231
    %v751 = vunpack.c.l.b16 %v232
    %v752 = vunpack.c.h.b16 %v232
    %v753 = vunpack.c.l.b16 %v233
    %v754 = vunpack.c.l.b16 %v234
    %v755 = vunpack.c.h.b16 %v234
    %v756 = vunpack.c.l.b16 %v235
    %v757 = vunpack.c.l.b16 %v236
    %v758 = vunpack.c.h.b16 %v236
    %v759 = vunpack.c.l.b16 %v237
    %v760 = vpack.c.b16 %v469, %v466
    %v761 = vpack.c.b16 %v470, %v467
    %v762 = vpack.c.b16 %v471, %v468
    %v763 = vpack.c.b16 %v475, %v472
    %v764 = vpack.c.b16 %v476, %v473
    %v765 = vpack.c.b16 %v477, %v474
    %v766 = vpack.c.b16 %v481, %v478
    %v767 = vpack.c.b16 %v482, %v479
    %v768 = vpack.c.b16 %v483, %v480
    %v769 = vpack.c.b16 %v487, %v484
    %v770 = vpack.c.b16 %v488, %v485
    %v771 = vpack.c.b16 %v489, %v486
    %v772 = vpack.c.b16 %v493, %v490
    %v773 = vpack.c.b16 %v494, %v491
    %v774 = vpack.c.b16 %v495, %v492
    %v775 = vpack.c.b16 %v499, %v496
    %v776 = vpack.c.b16 %v500, %v497
    %v777 = vpack.c.b16 %v501, %v498
    %v778 = vpack.c.b16 %v505, %v502
    %v779 = vpack.c.b16 %v506, %v503
    %v780 = vpack.c.b16 %v507, %v504
    %v781 = vpack.c.b16 %v511, %v508
    %v782 = vpack.c.b16 %v512, %v509
    %v783 = vpack.c.b16 %v513, %v510
    %v784 = vpack.c.b16 %v517, %v514
    %v785 = vpack.c.b16 %v518, %v515
    %v786 = vpack.c.b16 %v519, %v516
    %v787 = vpack.c.b16 %v523, %v520
    %v788 = vpack.c.b16 %v524, %v521
    %v789 = vpack.c.b16 %v525, %v522
    %v790 = vpack.c.b16 %v529, %v526
    %v791 = vpack.c.b16 %v530, %v527
    %v792 = vpack.c.b16 %v531, %v528
    %v793 = vpack.c.b16 %v535, %v532
    %v794 = vpack.c.b16 %v536, %v533
    %v795 = vpack.c.b16 %v537, %v534
    %v796 = vpack.c.b16 %v541, %v538
    %v797 = vpack.c.b16 %v542, %v539
    %v798 = vpack.c.b16 %v543, %v540
    %v799 = vpack.c.b16 %v547, %v544
    %v800 = vpack.c.b16 %v548, %v545
    %v801 = vpack.c.b16 %v549, %v546
    %v802 = vpack.c.b16 %v553, %v550
    %v803 = vpack.c.b16 %v554, %v551
    %v804 = vpack.c.b16 %v555, %v552
    %v805 = vpack.c.b16 %v559, %v556
    %v806 = vpack.c.b16 %v560, %v557
    %v807 = vpack.c.b16 %v561, %v558
    %v808 = vpack.c.b16 %v565, %v562
    %v809 = vpack.c.b16 %v566, %v563
    %v810 = vpack.c.b16 %v567, %v564
    %v811 = vpack.c.b16 %v571, %v568
    %v812 = vpack.c.b16 %v572, %v569
    %v813 = vpack.c.b16 %v573, %v570
    %v814 = vpack.c.b16 %v577, %v574
    %v815 = vpack.c.b16 %v578, %v575
    %v816 = vpack.c.b16 %v579, %v576
    %v817 = vpack.c.b16 %v583, %v580
    %v818 = vpack.c.b16 %v584, %v581
    %v819 = vpack.c.b16 %v585, %v582
    %v820 = vpack.c.b16 %v589, %v586
    %v821 = vpack.c.b16 %v590, %v587
    %v822 = vpack.c.b16 %v591, %v588
    %v823 = vpack.c.b16 %v595, %v592
    %v824 = vpack.c.b16 %v596, %v593
    %v825 = vpack.c.b16 %v597, %v594
    %v826 = vpack.c.b16 %v601, %v598
    %v827 = vpack.c.b16 %v602, %v599
    %v828 = vpack.c.b16 %v603, %v600
    %v829 = vpack.c.b16 %v607, %v604
    %v830 = vpack.c.b16 %v608, %v605
    %v831 = vpack.c.b16 %v609, %v606
    %v832 = vpack.c.b16 %v613, %v610
    %v833 = vpack.c.b16 %v614, %v611
    %v834 = vpack.c.b16 %v615, %v612
    %v835 = vpack.c.b16 %v619, %v616
    %v836 = vpack.c.b16 %v620, %v617
    %v837 = vpack.c.b16 %v621, %v618
    %v838 = vpack.c.b16 %v625, %v622
    %v839 = vpack.c.b16 %v626, %v623
    %v840 = vpack.c.b16 %v627, %v624
    %v841 = vpack.c.b16 %v631, %v628
    %v842 = vpack.c.b16 %v632, %v629
    %v843 = vpack.c.b16 %v633, %v630
    %v844 = vpack.c.b16 %v637, %v634
    %v845 = vpack.c.b16 %v638, %v635
    %v846 = vpack.c.b16 %v639, %v636
    %v847 = vpack.c.b16 %v643, %v640
    %v848 = vpack.c.b16 %v644, %v641
    %v849 = vpack.c.b16 %v645, %v642
    %v850 = vpack.c.b16 %v649, %v646
    %v851 = vpack.c.b16 %v650, %v647
    %v852 = vpack.c.b16 %v651, %v648
    %v853 = vpack.c.b16 %v655, %v652
    %v854 = vpack.c.b16 %v656, %v653
    %v855 = vpack.c.b16 %v657, %v654
    %v856 = vpack.c.b16 %v661, %v658
    %v857 = vpack.c.b16 %v662, %v659
    %v858 = vpack.c.b16 %v663, %v660
    %v859 = vpack.c.b16 %v667, %v664
    %v860 = vpack.c.b16 %v668, %v665
    %v861 = vpack.c.b16 %v669, %v666
    %v862 = vpack.c.b16 %v673, %v670
    %v863 = vpack.c.b16 %v674, %v671
    %v864 = vpack.c.b16 %v675, %v672
    %v865 = vpack.c.b16 %v679, %v676
    %v866 = vpack.c.b16 %v680, %v677
    %v867 = vpack.c.b16 %v681, %v678
    %v868 = vpack.c.b16 %v685, %v682
    %v869 = vpack.c.b16 %v686, %v683
    %v870 = vpack.c.b16 %v687, %v684
    %v871 = vpack.c.b16 %v691, %v688
    %v872 = vpack.c.b16 %v692, %v689
    %v873 = vpack.c.b16 %v693, %v690
    %v874 = vpack.c.b16 %v697, %v694
    %v875 = vpack.c.b16 %v698, %v695
    %v876 = vpack.c.b16 %v699, %v696
    %v877 = vpack.c.b16 %v703, %v700
    %v878 = vpack.c.b16 %v704, %v701
    %v879 = vpack.c.b16 %v705, %v702
    %v880 = vpack.c.b16 %v709, %v706
    %v881 = vpack.c.b16 %v710, %v707
    %v882 = vpack.c.b16 %v711, %v708
    %v883 = vpack.c.b16 %v715, %v712
    %v884 = vpack.c.b16 %v716, %v713
    %v885 = vpack.c.b16 %v717, %v714
    %v886 = vpack.c.b16 %v721, %v718
    %v887 = vpack.c.b16 %v722, %v719
    %v888 = vpack.c.b16 %v723, %v720
    %v889 = vpack.c.b16 %v727, %v724
    %v890 = vpack.c.b16 %v728, %v725
    %v891 = vpack.c.b16 %v729, %v726
    %v892 = vpack.c.b16 %v733, %v730
    %v893 = vpack.c.b16 %v734, %v731
    %v894 = vpack.c.b16 %v735, %v732
    %v895 = vpack.c.b16 %v739, %v736
    %v896 = vpack.c.b16 %v740, %v737
    %v897 = vpack.c.b16 %v741, %v738
    %v898 = vpack.c.b16 %v745, %v742
    %v899 = vpack.c.b16 %v746, %v743
    %v900 = vpack.c.b16 %v747, %v744
    %v901 = vpack.c.b16 %v751, %v748
    %v902 = vpack.c.b16 %v752, %v749
    %v903 = vpack.c.b16 %v753, %v750
    %v904 = vpack.c.b16 %v757, %v754
    %v905 = vpack.c.b16 %v758, %v755
    %v906 = vpack.c.b16 %v759, %v756
    %vm1054 = vcmask 130048
    %v1056 = vsel %vm1054, %v263, 0
    %1058 = vmatpush.bf16.msra.mxu0 %v781
    %1059 = vmatpush.bf16.msra.mxu0 %v778
    %1060 = vmatpush.bf16.msra.mxu0 %v775
    %1061 = vmatpush.bf16.msra.mxu0 %v772
    %1062 = vmatpush.bf16.msra.mxu0 %v769
    %1063 = vmatpush.bf16.msra.mxu0 %v766
    %1064 = vmatpush.bf16.msra.mxu0 %v763
    %1065 = vmatpush.bf16.msra.mxu0 %v760
    %1066 = vmatmul.bf16.gmra.mxu0 %v257
    %v1067 = vpop.f32.mrf.mxu0
    %v1068 = vadd.f32 %v240, %v1067
    %v1069 = vpop.f32.mrf.mxu0
    %1070 = vdwg.mxu0
    %1071 = vmatpush.bf16.msra.mxu0 %v805
    %1072 = vmatpush.bf16.msra.mxu0 %v802
    %1073 = vmatpush.bf16.msra.mxu0 %v799
    %1074 = vmatpush.bf16.msra.mxu0 %v796
    %1075 = vmatpush.bf16.msra.mxu0 %v793
    %1076 = vmatpush.bf16.msra.mxu0 %v790
    %1077 = vmatpush.bf16.msra.mxu0 %v787
    %1078 = vmatpush.bf16.msra.mxu0 %v784
    %1079 = vmatmul.bf16.gmra.mxu0 %v258
    %v1080 = vpop.f32.mrf.mxu0
    %v1081 = vadd.f32 %v1068, %v1080
    %v1082 = vpop.f32.mrf.mxu0
    %1083 = vdwg.mxu0
    %1084 = vmatpush.bf16.msra.mxu0 %v829
    %1085 = vmatpush.bf16.msra.mxu0 %v826
    %1086 = vmatpush.bf16.msra.mxu0 %v823
    %1087 = vmatpush.bf16.msra.mxu0 %v820
    %1088 = vmatpush.bf16.msra.mxu0 %v817
    %1089 = vmatpush.bf16.msra.mxu0 %v814
    %1090 = vmatpush.bf16.msra.mxu0 %v811
    %1091 = vmatpush.bf16.msra.mxu0 %v808
    %1092 = vmatmul.bf16.gmra.mxu0 %v259
    %v1093 = vpop.f32.mrf.mxu0
    %v1094 = vadd.f32 %v1081, %v1093
    %v1095 = vpop.f32.mrf.mxu0
    %1096 = vdwg.mxu0
    %1097 = vmatpush.bf16.msra.mxu0 %v853
    %1098 = vmatpush.bf16.msra.mxu0 %v850
    %1099 = vmatpush.bf16.msra.mxu0 %v847
    %1100 = vmatpush.bf16.msra.mxu0 %v844
    %1101 = vmatpush.bf16.msra.mxu0 %v841
    %1102 = vmatpush.bf16.msra.mxu0 %v838
    %1103 = vmatpush.bf16.msra.mxu0 %v835
    %1104 = vmatpush.bf16.msra.mxu0 %v832
    %1105 = vmatmul.bf16.gmra.mxu0 %v260
    %v1106 = vpop.f32.mrf.mxu0
    %v1107 = vadd.f32 %v1094, %v1106
    %v1108 = vpop.f32.mrf.mxu0
    %1109 = vdwg.mxu0
    %1110 = vmatpush.bf16.msra.mxu0 %v877
    %1111 = vmatpush.bf16.msra.mxu0 %v874
    %1112 = vmatpush.bf16.msra.mxu0 %v871
    %1113 = vmatpush.bf16.msra.mxu0 %v868
    %1114 = vmatpush.bf16.msra.mxu0 %v865
    %1115 = vmatpush.bf16.msra.mxu0 %v862
    %1116 = vmatpush.bf16.msra.mxu0 %v859
    %1117 = vmatpush.bf16.msra.mxu0 %v856
    %1118 = vmatmul.bf16.gmra.mxu0 %v261
    %v1119 = vpop.f32.mrf.mxu0
    %v1120 = vadd.f32 %v1107, %v1119
    %v1121 = vpop.f32.mrf.mxu0
    %1122 = vdwg.mxu0
    %1123 = vmatpush.bf16.msra.mxu0 %v901
    %1124 = vmatpush.bf16.msra.mxu0 %v898
    %1125 = vmatpush.bf16.msra.mxu0 %v895
    %1126 = vmatpush.bf16.msra.mxu0 %v892
    %1127 = vmatpush.bf16.msra.mxu0 %v889
    %1128 = vmatpush.bf16.msra.mxu0 %v886
    %1129 = vmatpush.bf16.msra.mxu0 %v883
    %1130 = vmatpush.bf16.msra.mxu0 %v880
    %1131 = vmatmul.bf16.gmra.mxu0 %v262
    %v1132 = vpop.f32.mrf.mxu0
    %v1133 = vadd.f32 %v1120, %v1132
    %v1134 = vpop.f32.mrf.mxu0
    %1135 = vdwg.mxu0
    %1136 = vmatpush.bf16.msra.mxu0 0
    %1137 = vmatpush.bf16.msra.mxu0 0
    %1138 = vmatpush.bf16.msra.mxu0 0
    %1139 = vmatpush.bf16.msra.mxu0 0
    %1140 = vmatpush.bf16.msra.mxu0 0
    %1141 = vmatpush.bf16.msra.mxu0 0
    %1142 = vmatpush.bf16.msra.mxu0 0
    %1143 = vmatpush.bf16.msra.mxu0 %v904
    %1144 = vmatmul.bf16.gmra.mxu0 %v1056
    %v1145 = vpop.f32.mrf.mxu0
    %v1146 = vadd.f32 %v1133, %v1145
    %v1147 = vpop.f32.mrf.mxu0
    %1148 = vdwg.mxu0
    %1149 = vmatpush.bf16.msra.mxu0 %v782
    %1150 = vmatpush.bf16.msra.mxu0 %v779
    %1151 = vmatpush.bf16.msra.mxu0 %v776
    %1152 = vmatpush.bf16.msra.mxu0 %v773
    %1153 = vmatpush.bf16.msra.mxu0 %v770
    %1154 = vmatpush.bf16.msra.mxu0 %v767
    %1155 = vmatpush.bf16.msra.mxu0 %v764
    %1156 = vmatpush.bf16.msra.mxu0 %v761
    %1157 = vmatmul.bf16.gmra.mxu0 %v257
    %v1158 = vpop.f32.mrf.mxu0
    %v1159 = vadd.f32 %v241, %v1158
    %v1160 = vpop.f32.mrf.mxu0
    %1161 = vdwg.mxu0
    %1162 = vmatpush.bf16.msra.mxu0 %v806
    %1163 = vmatpush.bf16.msra.mxu0 %v803
    %1164 = vmatpush.bf16.msra.mxu0 %v800
    %1165 = vmatpush.bf16.msra.mxu0 %v797
    %1166 = vmatpush.bf16.msra.mxu0 %v794
    %1167 = vmatpush.bf16.msra.mxu0 %v791
    %1168 = vmatpush.bf16.msra.mxu0 %v788
    %1169 = vmatpush.bf16.msra.mxu0 %v785
    %1170 = vmatmul.bf16.gmra.mxu0 %v258
    %v1171 = vpop.f32.mrf.mxu0
    %v1172 = vadd.f32 %v1159, %v1171
    %v1173 = vpop.f32.mrf.mxu0
    %1174 = vdwg.mxu0
    %1175 = vmatpush.bf16.msra.mxu0 %v830
    %1176 = vmatpush.bf16.msra.mxu0 %v827
    %1177 = vmatpush.bf16.msra.mxu0 %v824
    %1178 = vmatpush.bf16.msra.mxu0 %v821
    %1179 = vmatpush.bf16.msra.mxu0 %v818
    %1180 = vmatpush.bf16.msra.mxu0 %v815
    %1181 = vmatpush.bf16.msra.mxu0 %v812
    %1182 = vmatpush.bf16.msra.mxu0 %v809
    %1183 = vmatmul.bf16.gmra.mxu0 %v259
    %v1184 = vpop.f32.mrf.mxu0
    %v1185 = vadd.f32 %v1172, %v1184
    %v1186 = vpop.f32.mrf.mxu0
    %1187 = vdwg.mxu0
    %1188 = vmatpush.bf16.msra.mxu0 %v854
    %1189 = vmatpush.bf16.msra.mxu0 %v851
    %1190 = vmatpush.bf16.msra.mxu0 %v848
    %1191 = vmatpush.bf16.msra.mxu0 %v845
    %1192 = vmatpush.bf16.msra.mxu0 %v842
    %1193 = vmatpush.bf16.msra.mxu0 %v839
    %1194 = vmatpush.bf16.msra.mxu0 %v836
    %1195 = vmatpush.bf16.msra.mxu0 %v833
    %1196 = vmatmul.bf16.gmra.mxu0 %v260
    %v1197 = vpop.f32.mrf.mxu0
    %v1198 = vadd.f32 %v1185, %v1197
    %v1199 = vpop.f32.mrf.mxu0
    %1200 = vdwg.mxu0
    %1201 = vmatpush.bf16.msra.mxu0 %v878
    %1202 = vmatpush.bf16.msra.mxu0 %v875
    %1203 = vmatpush.bf16.msra.mxu0 %v872
    %1204 = vmatpush.bf16.msra.mxu0 %v869
    %1205 = vmatpush.bf16.msra.mxu0 %v866
    %1206 = vmatpush.bf16.msra.mxu0 %v863
    %1207 = vmatpush.bf16.msra.mxu0 %v860
    %1208 = vmatpush.bf16.msra.mxu0 %v857
    %1209 = vmatmul.bf16.gmra.mxu0 %v261
    %v1210 = vpop.f32.mrf.mxu0
    %v1211 = vadd.f32 %v1198, %v1210
    %v1212 = vpop.f32.mrf.mxu0
    %1213 = vdwg.mxu0
    %1214 = vmatpush.bf16.msra.mxu0 %v902
    %1215 = vmatpush.bf16.msra.mxu0 %v899
    %1216 = vmatpush.bf16.msra.mxu0 %v896
    %1217 = vmatpush.bf16.msra.mxu0 %v893
    %1218 = vmatpush.bf16.msra.mxu0 %v890
    %1219 = vmatpush.bf16.msra.mxu0 %v887
    %1220 = vmatpush.bf16.msra.mxu0 %v884
    %1221 = vmatpush.bf16.msra.mxu0 %v881
    %1222 = vmatmul.bf16.gmra.mxu0 %v262
    %v1223 = vpop.f32.mrf.mxu0
    %v1224 = vadd.f32 %v1211, %v1223
    %v1225 = vpop.f32.mrf.mxu0
    %1226 = vdwg.mxu0
    %1227 = vmatpush.bf16.msra.mxu0 0
    %1228 = vmatpush.bf16.msra.mxu0 0
    %1229 = vmatpush.bf16.msra.mxu0 0
    %1230 = vmatpush.bf16.msra.mxu0 0
    %1231 = vmatpush.bf16.msra.mxu0 0
    %1232 = vmatpush.bf16.msra.mxu0 0
    %1233 = vmatpush.bf16.msra.mxu0 0
    %1234 = vmatpush.bf16.msra.mxu0 %v905
    %1235 = vmatmul.bf16.gmra.mxu0 %v1056
    %v1236 = vpop.f32.mrf.mxu0
    %v1237 = vadd.f32 %v1224, %v1236
    %v1238 = vpop.f32.mrf.mxu0
    %1239 = vdwg.mxu0
    %1240 = vmatpush.bf16.msra.mxu0 %v783
    %1241 = vmatpush.bf16.msra.mxu0 %v780
    %1242 = vmatpush.bf16.msra.mxu0 %v777
    %1243 = vmatpush.bf16.msra.mxu0 %v774
    %1244 = vmatpush.bf16.msra.mxu0 %v771
    %1245 = vmatpush.bf16.msra.mxu0 %v768
    %1246 = vmatpush.bf16.msra.mxu0 %v765
    %1247 = vmatpush.bf16.msra.mxu0 %v762
    %1248 = vmatmul.bf16.gmra.mxu0 %v257
    %v1249 = vpop.f32.mrf.mxu0
    %v1250 = vadd.f32 %v242, %v1249
    %v1251 = vpop.f32.mrf.mxu0
    %1252 = vdwg.mxu0
    %1253 = vmatpush.bf16.msra.mxu0 %v807
    %1254 = vmatpush.bf16.msra.mxu0 %v804
    %1255 = vmatpush.bf16.msra.mxu0 %v801
    %1256 = vmatpush.bf16.msra.mxu0 %v798
    %1257 = vmatpush.bf16.msra.mxu0 %v795
    %1258 = vmatpush.bf16.msra.mxu0 %v792
    %1259 = vmatpush.bf16.msra.mxu0 %v789
    %1260 = vmatpush.bf16.msra.mxu0 %v786
    %1261 = vmatmul.bf16.gmra.mxu0 %v258
    %v1262 = vpop.f32.mrf.mxu0
    %v1263 = vadd.f32 %v1250, %v1262
    %v1264 = vpop.f32.mrf.mxu0
    %1265 = vdwg.mxu0
    %1266 = vmatpush.bf16.msra.mxu0 %v831
    %1267 = vmatpush.bf16.msra.mxu0 %v828
    %1268 = vmatpush.bf16.msra.mxu0 %v825
    %1269 = vmatpush.bf16.msra.mxu0 %v822
    %1270 = vmatpush.bf16.msra.mxu0 %v819
    %1271 = vmatpush.bf16.msra.mxu0 %v816
    %1272 = vmatpush.bf16.msra.mxu0 %v813
    %1273 = vmatpush.bf16.msra.mxu0 %v810
    %1274 = vmatmul.bf16.gmra.mxu0 %v259
    %v1275 = vpop.f32.mrf.mxu0
    %v1276 = vadd.f32 %v1263, %v1275
    %v1277 = vpop.f32.mrf.mxu0
    %1278 = vdwg.mxu0
    %1279 = vmatpush.bf16.msra.mxu0 %v855
    %1280 = vmatpush.bf16.msra.mxu0 %v852
    %1281 = vmatpush.bf16.msra.mxu0 %v849
    %1282 = vmatpush.bf16.msra.mxu0 %v846
    %1283 = vmatpush.bf16.msra.mxu0 %v843
    %1284 = vmatpush.bf16.msra.mxu0 %v840
    %1285 = vmatpush.bf16.msra.mxu0 %v837
    %1286 = vmatpush.bf16.msra.mxu0 %v834
    %1287 = vmatmul.bf16.gmra.mxu0 %v260
    %v1288 = vpop.f32.mrf.mxu0
    %v1289 = vadd.f32 %v1276, %v1288
    %v1290 = vpop.f32.mrf.mxu0
    %1291 = vdwg.mxu0
    %1292 = vmatpush.bf16.msra.mxu0 %v879
    %1293 = vmatpush.bf16.msra.mxu0 %v876
    %1294 = vmatpush.bf16.msra.mxu0 %v873
    %1295 = vmatpush.bf16.msra.mxu0 %v870
    %1296 = vmatpush.bf16.msra.mxu0 %v867
    %1297 = vmatpush.bf16.msra.mxu0 %v864
    %1298 = vmatpush.bf16.msra.mxu0 %v861
    %1299 = vmatpush.bf16.msra.mxu0 %v858
    %1300 = vmatmul.bf16.gmra.mxu0 %v261
    %v1301 = vpop.f32.mrf.mxu0
    %v1302 = vadd.f32 %v1289, %v1301
    %v1303 = vpop.f32.mrf.mxu0
    %1304 = vdwg.mxu0
    %1305 = vmatpush.bf16.msra.mxu0 %v903
    %1306 = vmatpush.bf16.msra.mxu0 %v900
    %1307 = vmatpush.bf16.msra.mxu0 %v897
    %1308 = vmatpush.bf16.msra.mxu0 %v894
    %1309 = vmatpush.bf16.msra.mxu0 %v891
    %1310 = vmatpush.bf16.msra.mxu0 %v888
    %1311 = vmatpush.bf16.msra.mxu0 %v885
    %1312 = vmatpush.bf16.msra.mxu0 %v882
    %1313 = vmatmul.bf16.gmra.mxu0 %v262
    %v1314 = vpop.f32.mrf.mxu0
    %v1315 = vadd.f32 %v1302, %v1314
    %v1316 = vpop.f32.mrf.mxu0
    %1317 = vdwg.mxu0
    %1318 = vmatpush.bf16.msra.mxu0 0
    %1319 = vmatpush.bf16.msra.mxu0 0
    %1320 = vmatpush.bf16.msra.mxu0 0
    %1321 = vmatpush.bf16.msra.mxu0 0
    %1322 = vmatpush.bf16.msra.mxu0 0
    %1323 = vmatpush.bf16.msra.mxu0 0
    %1324 = vmatpush.bf16.msra.mxu0 0
    %1325 = vmatpush.bf16.msra.mxu0 %v906
    %1326 = vmatmul.bf16.gmra.mxu0 %v1056
    %v1327 = vpop.f32.mrf.mxu0
    %v1328 = vadd.f32 %v1315, %v1327
    %v1329 = vpop.f32.mrf.mxu0
    %1330 = vdwg.mxu0
    %v1331 = vmax.f32 %v1146, 0.0
    %v1332 = vmax.f32 %v1237, 0.0
    %v1333 = vmax.f32 %v1328, 0.0
    %v1334 = vpack.c.bf16 %v1332, %v1331
    %v1335 = vpack.c.bf16 %v1333, %v1333
    %v1336 = vld [vmem:[%s3] sm:$0xf]
    %v1337 = vld [vmem:[%s3 + $0x4] sm:$0xf]
    %v1338 = vld [vmem:[%s3 + $0x8] sm:$0xf]
    %v1339 = vld [vmem:[%s3 + $0xc] sm:$0xf]
    %v1340 = vld [vmem:[%s3 + $0x10] sm:$0xf]
    %v1341 = vld [vmem:[%s3 + $0x14] sm:$0xf]
    %v1342 = vld [vmem:[%s3 + $0x18] sm:$0xf]
    %v1343 = vld [vmem:[%s3 + $0x1c] sm:$0xf]
    %v1344 = vld [vmem:[%s3 + $0x20] sm:$0xf]
    %v1345 = vld [vmem:[%s3 + $0x24] sm:$0xf]
    %v1346 = vld [vmem:[%s3 + $0x28] sm:$0xf]
    %v1347 = vld [vmem:[%s3 + $0x2c] sm:$0xf]
    %v1348 = vld [vmem:[%s3 + $0x30] sm:$0xf]
    %v1349 = vld [vmem:[%s3 + $0x34] sm:$0xf]
    %v1350 = vld [vmem:[%s3 + $0x38] sm:$0xf]
    %v1351 = vld [vmem:[%s3 + $0x3c] sm:$0xf]
    %v1352 = vld [vmem:[%s4] sm:$0x1]
    %v1354 = vperm.slane %v1352, 0
    %v1372 = vunpack.c.l.b16 %v1336
    %v1373 = vunpack.c.l.b16 %v1337
    %v1374 = vunpack.c.l.b16 %v1338
    %v1375 = vunpack.c.l.b16 %v1339
    %v1376 = vunpack.c.l.b16 %v1340
    %v1377 = vunpack.c.l.b16 %v1341
    %v1378 = vunpack.c.l.b16 %v1342
    %v1379 = vunpack.c.l.b16 %v1343
    %v1380 = vunpack.c.l.b16 %v1344
    %v1381 = vunpack.c.l.b16 %v1345
    %v1382 = vunpack.c.l.b16 %v1346
    %v1383 = vunpack.c.l.b16 %v1347
    %v1384 = vunpack.c.l.b16 %v1348
    %v1385 = vunpack.c.l.b16 %v1349
    %v1386 = vunpack.c.l.b16 %v1350
    %v1387 = vunpack.c.l.b16 %v1351
    %v1388 = vpack.c.b16 %v1373, %v1372
    %v1389 = vpack.c.b16 %v1375, %v1374
    %v1390 = vpack.c.b16 %v1377, %v1376
    %v1391 = vpack.c.b16 %v1379, %v1378
    %v1392 = vpack.c.b16 %v1381, %v1380
    %v1393 = vpack.c.b16 %v1383, %v1382
    %v1394 = vpack.c.b16 %v1385, %v1384
    %v1395 = vpack.c.b16 %v1387, %v1386
    %1404 = vmatpush.bf16.msra.mxu0 %v1395
    %1405 = vmatpush.bf16.msra.mxu0 %v1394
    %1406 = vmatpush.bf16.msra.mxu0 %v1393
    %1407 = vmatpush.bf16.msra.mxu0 %v1392
    %1408 = vmatpush.bf16.msra.mxu0 %v1391
    %1409 = vmatpush.bf16.msra.mxu0 %v1390
    %1410 = vmatpush.bf16.msra.mxu0 %v1389
    %1411 = vmatpush.bf16.msra.mxu0 %v1388
    %1412 = vmatmul.bf16.gmra.mxu0 %v1334
    %v1413 = vpop.f32.mrf.mxu0
    %v1414 = vadd.f32 %v1354, %v1413
    %v1415 = vpop.f32.mrf.mxu0
    %1416 = vdwg.mxu0
    %s1417 = scalar_lea.vmem %s3, 64
    %v1418 = vld [vmem:[%s1417] sm:$0xf]
    %v1419 = vld [vmem:[%s1417 + $0x4] sm:$0xf]
    %v1420 = vld [vmem:[%s1417 + $0x8] sm:$0xf]
    %v1421 = vld [vmem:[%s1417 + $0xc] sm:$0xf]
    %v1422 = vld [vmem:[%s1417 + $0x10] sm:$0xf]
    %v1423 = vld [vmem:[%s1417 + $0x14] sm:$0xf]
    %v1424 = vld [vmem:[%s1417 + $0x18] sm:$0xf]
    %v1425 = vld [vmem:[%s1417 + $0x1c] sm:$0xf]
    %v1426 = vld [vmem:[%s1417 + $0x20] sm:$0xf]
    %v1427 = vld [vmem:[%s1417 + $0x24] sm:$0xf]
    %v1428 = vld [vmem:[%s1417 + $0x28] sm:$0xf]
    %v1429 = vld [vmem:[%s1417 + $0x2c] sm:$0xf]
    %v1430 = vld [vmem:[%s1417 + $0x30] sm:$0xf]
    %v1431 = vld [vmem:[%s1417 + $0x34] sm:$0xf]
    %v1432 = vld [vmem:[%s1417 + $0x38] sm:$0xf]
    %v1433 = vld [vmem:[%s1417 + $0x3c] sm:$0xf]
    %s1434 = scalar_lea.vmem %s4, 1
    %v1435 = vld [vmem:[%s1434] sm:$0x1]
    %v1437 = vperm.slane %v1435, 0
    %v1440 = vunpack.c.h.b16 %v1334
    %v1441 = vpack.c.b16 %v1440, %v1440
    %v1459 = vunpack.c.l.b16 %v1418
    %v1460 = vunpack.c.l.b16 %v1419
    %v1461 = vunpack.c.l.b16 %v1420
    %v1462 = vunpack.c.l.b16 %v1421
    %v1463 = vunpack.c.l.b16 %v1422
    %v1464 = vunpack.c.l.b16 %v1423
    %v1465 = vunpack.c.l.b16 %v1424
    %v1466 = vunpack.c.l.b16 %v1425
    %v1467 = vunpack.c.l.b16 %v1426
    %v1468 = vunpack.c.l.b16 %v1427
    %v1469 = vunpack.c.l.b16 %v1428
    %v1470 = vunpack.c.l.b16 %v1429
    %v1471 = vunpack.c.l.b16 %v1430
    %v1472 = vunpack.c.l.b16 %v1431
    %v1473 = vunpack.c.l.b16 %v1432
    %v1474 = vunpack.c.l.b16 %v1433
    %v1475 = vpack.c.b16 %v1460, %v1459
    %v1476 = vpack.c.b16 %v1462, %v1461
    %v1477 = vpack.c.b16 %v1464, %v1463
    %v1478 = vpack.c.b16 %v1466, %v1465
    %v1479 = vpack.c.b16 %v1468, %v1467
    %v1480 = vpack.c.b16 %v1470, %v1469
    %v1481 = vpack.c.b16 %v1472, %v1471
    %v1482 = vpack.c.b16 %v1474, %v1473
    %1491 = vmatpush.bf16.msra.mxu0 %v1482
    %1492 = vmatpush.bf16.msra.mxu0 %v1481
    %1493 = vmatpush.bf16.msra.mxu0 %v1480
    %1494 = vmatpush.bf16.msra.mxu0 %v1479
    %1495 = vmatpush.bf16.msra.mxu0 %v1478
    %1496 = vmatpush.bf16.msra.mxu0 %v1477
    %1497 = vmatpush.bf16.msra.mxu0 %v1476
    %1498 = vmatpush.bf16.msra.mxu0 %v1475
    %1499 = vmatmul.bf16.gmra.mxu0 %v1441
    %v1500 = vpop.f32.mrf.mxu0
    %v1501 = vadd.f32 %v1437, %v1500
    %v1502 = vpop.f32.mrf.mxu0
    %1503 = vdwg.mxu0
    %s1504 = scalar_lea.vmem %s3, 128
    %v1505 = vld [vmem:[%s1504] sm:$0xf]
    %v1506 = vld [vmem:[%s1504 + $0x4] sm:$0xf]
    %v1507 = vld [vmem:[%s1504 + $0x8] sm:$0xf]
    %v1508 = vld [vmem:[%s1504 + $0xc] sm:$0xf]
    %v1509 = vld [vmem:[%s1504 + $0x10] sm:$0xf]
    %v1510 = vld [vmem:[%s1504 + $0x14] sm:$0xf]
    %v1511 = vld [vmem:[%s1504 + $0x18] sm:$0xf]
    %v1512 = vld [vmem:[%s1504 + $0x1c] sm:$0xf]
    %v1513 = vld [vmem:[%s1504 + $0x20] sm:$0xf]
    %v1514 = vld [vmem:[%s1504 + $0x24] sm:$0xf]
    %v1515 = vld [vmem:[%s1504 + $0x28] sm:$0xf]
    %v1516 = vld [vmem:[%s1504 + $0x2c] sm:$0xf]
    %v1517 = vld [vmem:[%s1504 + $0x30] sm:$0xf]
    %v1518 = vld [vmem:[%s1504 + $0x34] sm:$0xf]
    %v1519 = vld [vmem:[%s1504 + $0x38] sm:$0xf]
    %v1520 = vld [vmem:[%s1504 + $0x3c] sm:$0xf]
    %s1521 = scalar_lea.vmem %s4, 2
    %v1522 = vld [vmem:[%s1521] sm:$0x1]
    %v1524 = vperm.slane %v1522, 0
    %v1542 = vunpack.c.l.b16 %v1505
    %v1543 = vunpack.c.l.b16 %v1506
    %v1544 = vunpack.c.l.b16 %v1507
    %v1545 = vunpack.c.l.b16 %v1508
    %v1546 = vunpack.c.l.b16 %v1509
    %v1547 = vunpack.c.l.b16 %v1510
    %v1548 = vunpack.c.l.b16 %v1511
    %v1549 = vunpack.c.l.b16 %v1512
    %v1550 = vunpack.c.l.b16 %v1513
    %v1551 = vunpack.c.l.b16 %v1514
    %v1552 = vunpack.c.l.b16 %v1515
    %v1553 = vunpack.c.l.b16 %v1516
    %v1554 = vunpack.c.l.b16 %v1517
    %v1555 = vunpack.c.l.b16 %v1518
    %v1556 = vunpack.c.l.b16 %v1519
    %v1557 = vunpack.c.l.b16 %v1520
    %v1558 = vpack.c.b16 %v1543, %v1542
    %v1559 = vpack.c.b16 %v1545, %v1544
    %v1560 = vpack.c.b16 %v1547, %v1546
    %v1561 = vpack.c.b16 %v1549, %v1548
    %v1562 = vpack.c.b16 %v1551, %v1550
    %v1563 = vpack.c.b16 %v1553, %v1552
    %v1564 = vpack.c.b16 %v1555, %v1554
    %v1565 = vpack.c.b16 %v1557, %v1556
    %1574 = vmatpush.bf16.msra.mxu0 %v1565
    %1575 = vmatpush.bf16.msra.mxu0 %v1564
    %1576 = vmatpush.bf16.msra.mxu0 %v1563
    %1577 = vmatpush.bf16.msra.mxu0 %v1562
    %1578 = vmatpush.bf16.msra.mxu0 %v1561
    %1579 = vmatpush.bf16.msra.mxu0 %v1560
    %1580 = vmatpush.bf16.msra.mxu0 %v1559
    %1581 = vmatpush.bf16.msra.mxu0 %v1558
    %1582 = vmatmul.bf16.gmra.mxu0 %v1335
    %v1583 = vpop.f32.mrf.mxu0
    %v1584 = vadd.f32 %v1524, %v1583
    %v1585 = vpop.f32.mrf.mxu0
    %1586 = vdwg.mxu0
    %vm1587 = vcmask 80896
    %v1588 = vsel %vm1587, %v1414, -inf
    %1589 = vmax.xlane.f32.xlu0 %v1588
    %v1590 = vpop.xlane.xlu0 %1589
    %vm1591 = vcmask 162896
    %v1592 = vsel %vm1591, %v1414, -inf
    %1593 = vmax.xlane.f32.xlu0 %v1592
    %v1594 = vpop.xlane.xlu0 %1593
    %vm1595 = vcmp.gt.f32.partialorder %v1594, %v1590
    %v1596 = vsel %vm1587, %v1501, -inf
    %1597 = vmax.xlane.f32.xlu0 %v1596
    %v1598 = vpop.xlane.xlu0 %1597
    %v1599 = vsel %vm1591, %v1501, -inf
    %1600 = vmax.xlane.f32.xlu0 %v1599
    %v1601 = vpop.xlane.xlu0 %1600
    %vm1602 = vcmp.gt.f32.partialorder %v1601, %v1598
    %v1603 = vsel %vm1587, %v1584, -inf
    %1604 = vmax.xlane.f32.xlu0 %v1603
    %v1605 = vpop.xlane.xlu0 %1604
    %v1606 = vsel %vm1591, %v1584, -inf
    %1607 = vmax.xlane.f32.xlu0 %v1606
    %v1608 = vpop.xlane.xlu0 %1607
    %vm1609 = vcmp.gt.f32.partialorder %v1608, %v1605
    %v1610 = vadd.f32 %v1414, %v1501
    %v1611 = vadd.f32 %v1610, %v1584
    %v1612 = vmul.f32 %v1611, 0.33333334
    %v1613 = vsel %vm1595, 1, 0
    %vm1614 = vcmp.eq.s32.totalorder %v1613, 1
    %v1615 = vsel %vm1614, %v1414, %v1612
    %v1616 = vsel %vm1602, 1, 0
    %vm1617 = vcmp.eq.s32.totalorder %v1616, 1
    %v1618 = vsel %vm1617, %v1501, %v1615
    %v1619 = vsel %vm1609, 1, 0
    %vm1620 = vcmp.eq.s32.totalorder %v1619, 1
    %v1621 = vsel %vm1620, %v1584, %v1618
    %vm1622 = vcmask 261120
    %1623 = vst.msk [vmem:[#allocation5] sm:$0xff] %vm1622, %v1621
    // Predicated region
    $region26: #{tpu_custom_call.1} parent=1 // pred_check
      _
    $region27: #{tpu_custom_call.1} parent=1 // pred_check_branch
      %1625 = sbr.rel (0) target = $region29
    $region28: #{tpu_custom_call.1} parent=1 // pred_region
      %1627 = vsyncadd [#allocation4], 0
      %s1629 = sshll.u32 [#allocation5], 4
      %s1630 = int_to_ptr.vmem [resolvable:$true] %s1629
      %s1631 = sshll.u32 %s5, 4
      %s1632 = int_to_ptr.hbm [resolvable:$true] %s1631
      %1634 = dma.vmem_to_hbm [thread:$0]  %s1630, 128, %s1632, [#allocation4]
    $region29: #{tpu_custom_call.1} parent=1 // pred_fallthru
      _
    // Predicated region
    $region30: #{tpu_custom_call.1} parent=1 // pred_check
      _
    $region31: #{tpu_custom_call.1} parent=1 // pred_check_branch
      %1636 = sbr.rel (0) target = $region33
    $region32: #{tpu_custom_call.1} parent=1 // pred_region
      %1638 = dma.done [#allocation4], 128
    $region33: #{tpu_custom_call.1} parent=1 // pred_fallthru
      _
    %1639 = vsyncpa [#allocation3], 1
    %1640 = vsyncpa [#allocation4], 1

</llo_original>
